<compile_context>
chip_gen: v7x
topology: tpu7x:2x2x1
jax: 0.10.0
libtpu: 0.0.40
codegen_flags: <defaults>
</compile_context>

<pallas_src>
import functools

import jax
import jax.numpy as jnp
from jax.experimental import pallas as pl
from jax.experimental.pallas import tpu as pltpu


def _round_up(n, m):
    return ((n + m - 1) // m) * m


def _default_vmem_limit():
    """Generation-aware scoped-VMEM cap (~half of physical VMEM, capped at 96 MiB).

    v5e/v6e (128 MiB VMEM) -> 64 MiB; v7x (64 MiB per TC) -> 32 MiB.
    """
    try:
        cap = pltpu.get_tpu_info().vmem_capacity_bytes
    except Exception:  # query unavailable: conservative (v7x-safe) default
        cap = 64 * 1024 * 1024
    return int(max(32 * 1024 * 1024, min(cap // 2, 96 * 1024 * 1024)))


def _qvalue_kernel(xa_ref, w1_ref, b1_ref, w2_ref, b2_ref, w3_ref, b3_ref,
                   out_ref, *, lane_major):
    # fc1 (torch.cat folded in the wrapper): one MXU matmul, f32 accumulation.
    h1 = jnp.dot(xa_ref[...], w1_ref[...], preferred_element_type=jnp.float32)
    h1 = jnp.maximum(h1 + b1_ref[...], 0.0)                  # f32 bias + ReLU

    # fc2
    h2 = jnp.dot(h1.astype(w2_ref.dtype), w2_ref[...],
                 preferred_element_type=jnp.float32)
    h2 = jnp.maximum(h2 + b2_ref[...], 0.0)                  # f32 bias + ReLU

    if lane_major:
        # fc3 as (1, H) x (tb, H)^T on the MXU -> (1, tb): batch lands on the
        # lane axis, so the store is lane-dense (unmasked vst) and HBM
        # writeback is exactly 4 B/row (vs 512 B/row with a 128-lane slab).
        q = jax.lax.dot_general(
            w3_ref[...], h2, dimension_numbers=(((1,), (1,)), ((), ())),
            preferred_element_type=jnp.float32)               # (1, tb)
        out_ref[...] = (q + b3_ref[...]).astype(out_ref.dtype)
    else:
        # Tiny-batch fallback (tb < 128): VPU multiply + lane reduction into a
        # (tb, 1) column; still only 4 B/row of HBM writeback.
        q = jnp.sum(h2 * w3_ref[...], axis=-1, keepdims=True)
        out_ref[...] = (q + b3_ref[...]).astype(out_ref.dtype)


def qvalue_forward(x, a, params, *, block_b=2048, compute_dtype=jnp.bfloat16):
    """x: (B, state_dim), a: (B, action_dim) -> (B, 1) float32.

    compute_dtype=bfloat16 (default) halves matmul/activation DMA bytes on
    v5e/v6e/v7x while keeping f32 accumulation and an f32 epilogue; pass
    jnp.float32 for bit-tight parity with an f32 reference.
    """
    w1, b1, w2, b2, w3, b3 = params      # torch layout: W (out, in), b (1, out)
    B, state_dim = x.shape
    action_dim = a.shape[1]
    hidden_dim = w1.shape[0]
    cat_dim = state_dim + action_dim

    # --- layout plumbing (one-time, outside the kernel) ---------------------
    w1t = w1.T.astype(compute_dtype)                      # (S+A, H) MXU-ready
    w2t = w2.T.astype(compute_dtype)                      # (H, H)
    w3r = w3.reshape(1, hidden_dim).astype(jnp.float32)   # fc3 row, f32 epilogue
    b1r = b1.reshape(1, hidden_dim).astype(jnp.float32)
    b2r = b2.reshape(1, hidden_dim).astype(jnp.float32)
    b3r = b3.reshape(1, 1).astype(jnp.float32)

    # torch.cat folded here: one activation stream, one merged fc1 matmul.
    xa = jnp.concatenate([x, a], axis=1).astype(compute_dtype)

    itemsize = jnp.finfo(compute_dtype).bits // 8
    align = 16 if itemsize <= 2 else 8                    # bf16 sublane packing
    vmem_limit = _default_vmem_limit()

    def tile_bytes(tb):
        act_in = 2 * tb * cat_dim * itemsize              # double-buffered input
        act_out = 2 * tb * 4                              # double-buffered output
        temps = 2 * tb * hidden_dim * 4                   # h1, h2 f32 temporaries
        weights = 2 * ((cat_dim + hidden_dim) * hidden_dim * itemsize
                       + (3 * hidden_dim + 1) * 4)        # resident constants
        return act_in + act_out + temps + weights

    # --- batch tiling --------------------------------------------------------
    padded0 = _round_up(B, align)
    tb = max(align, min(_round_up(block_b, align), padded0))
    # v7x has 2 TensorCores: guarantee >= 2 "parallel" tiles for real batches.
    if padded0 >= 256 and tb >= padded0:
        tb = _round_up((padded0 + 1) // 2, 128)
    # Keep the two f32 temporaries + blocks comfortably inside the VMEM budget.
    while tb > align and tile_bytes(tb) > vmem_limit // 2:
        tb = max(align, _round_up(tb // 2, align))

    lane_major = (tb % 128 == 0)
    padded_b = _round_up(B, tb)
    if padded_b != B:
        xa = jnp.pad(xa, ((0, padded_b - B), (0, 0)))
    num_tiles = padded_b // tb

    act_spec = pl.BlockSpec((tb, cat_dim), lambda i: (i, 0))
    # Constant block index -> fetched once, VMEM-resident across all tiles.
    # (At production hidden sizes also mark these pipeline_mode=pl.Buffered(1)
    #  so v7x does not double-buffer resident weights.)
    const = lambda arr: pl.BlockSpec(arr.shape, lambda i: (0,) * arr.ndim)

    if lane_major:
        out_shape = jax.ShapeDtypeStruct((1, padded_b), jnp.float32)
        out_spec = pl.BlockSpec((1, tb), lambda i: (0, i))
    else:
        out_shape = jax.ShapeDtypeStruct((padded_b, 1), jnp.float32)
        out_spec = pl.BlockSpec((tb, 1), lambda i: (i, 0))

    kernel = functools.partial(_qvalue_kernel, lane_major=lane_major)

    out = pl.pallas_call(
        kernel,
        out_shape=out_shape,
        grid=(num_tiles,),
        in_specs=[act_spec, const(w1t), const(b1r), const(w2t), const(b2r),
                  const(w3r), const(b3r)],
        out_specs=out_spec,
        compiler_params=pltpu.CompilerParams(
            dimension_semantics=("parallel",),     # shards tiles across v7x TCs
            vmem_limit_bytes=vmem_limit,
        ),
    )(xa, w1t, b1r, w2t, b2r, w3r, b3r)

    if lane_major:
        return out[0, :B].reshape(B, 1)    # padded rows (garbage) are sliced off
    return out[:B]


def init_params(key, state_dim, hidden_dim, action_dim):
    """Deterministic init mimicking torch.nn.Linear default (U[-1/sqrt(fan_in), ...])."""
    def linear(k, fan_in, fan_out):
        kw, kb = jax.random.split(k)
        bound = 1.0 / jnp.sqrt(fan_in)
        w = jax.random.uniform(kw, (fan_out, fan_in), jnp.float32, -bound, bound)
        b = jax.random.uniform(kb, (1, fan_out), jnp.float32, -bound, bound)
        return w, b

    k1, k2, k3 = jax.random.split(key, 3)
    w1, b1 = linear(k1, state_dim + action_dim, hidden_dim)
    w2, b2 = linear(k2, hidden_dim, hidden_dim)
    w3, b3 = linear(k3, hidden_dim, 1)
    return (w1, b1, w2, b2, w3, b3)


def reference_forward(x, a, params):
    """Pure-JAX reference (same math as the PyTorch module)."""
    w1, b1, w2, b2, w3, b3 = params
    cat = jnp.concatenate([x, a], axis=1)
    h1 = jnp.maximum(cat @ w1.T + b1, 0.0)
    h2 = jnp.maximum(h1 @ w2.T + b2, 0.0)
    return jnp.sum(h2 * w3, axis=-1, keepdims=True) + b3


if __name__ == "__main__":
    state_dim, hidden_dim, action_dim = 8, 32, 4

    key = jax.random.PRNGKey(0)
    kx, ka, kp = jax.random.split(key, 3)
    params = init_params(kp, state_dim, hidden_dim, action_dim)

    # 1) tiny demo batch: exercises the (tb, 1) column fallback path, f32, tight check.
    x_s = jax.random.normal(kx, (8, state_dim), jnp.float32)
    a_s = jax.random.normal(ka, (8, action_dim), jnp.float32)
    q_s = qvalue_forward(x_s, a_s, params, compute_dtype=jnp.float32)
    jax.block_until_ready(q_s)
    ref_s = reference_forward(x_s, a_s, params)
    assert q_s.shape == (8, 1)
    assert jnp.allclose(q_s, ref_s, atol=1e-4, rtol=1e-4), "f32 small-batch mismatch"

    # 2) multi-tile batch: lane-major output + >=2 grid tiles (f32 path).
    x_l = jax.random.normal(kx, (1024, state_dim), jnp.float32)
    a_l = jax.random.normal(ka, (1024, action_dim), jnp.float32)
    q_l = qvalue_forward(x_l, a_l, params, compute_dtype=jnp.float32)
    jax.block_until_ready(q_l)
    ref_l = reference_forward(x_l, a_l, params)
    assert q_l.shape == (1024, 1)
    assert jnp.allclose(q_l, ref_l, atol=1e-3, rtol=1e-3), "f32 lane-major mismatch"

    # 3) default bf16 compute path (production config): expected quantization
    #    loss, so a loose tolerance only.
    q_b = qvalue_forward(x_l, a_l, params)
    jax.block_until_ready(q_b)
    assert q_b.shape == (1024, 1)
    assert jnp.allclose(q_b, ref_l, atol=5e-2, rtol=5e-2), "bf16 path mismatch"

    print("KERNEL_OK")
</pallas_src>

<mosaic_0001>
module attributes {stable_mosaic.version = 11 : i64} {
  func.func @_qvalue_kernel(%arg0: i32, %arg1: memref<8x12xf32, #tpu.memory_space<vmem>>, %arg2: memref<12x32xf32, #tpu.memory_space<vmem>>, %arg3: memref<1x32xf32, #tpu.memory_space<vmem>>, %arg4: memref<32x32xf32, #tpu.memory_space<vmem>>, %arg5: memref<1x32xf32, #tpu.memory_space<vmem>>, %arg6: memref<1x32xf32, #tpu.memory_space<vmem>>, %arg7: memref<1x1xf32, #tpu.memory_space<vmem>>, %arg8: memref<8x1xf32, #tpu.memory_space<vmem>>) attributes {dimension_semantics = [#tpu.dimension_semantics<parallel>], iteration_bounds = array<i64: 1>, scalar_prefetch = 0 : i64, scratch_operands = 0 : i64, tpu.core_type = #tpu.core_type<tc>, window_params = [{transform_indices = @transform_0, window_bounds = array<i64: 8, 12>}, {pipeline_mode = #tpu.pipeline_mode<synchronous>, transform_indices = @transform_1, window_bounds = array<i64: 12, 32>}, {pipeline_mode = #tpu.pipeline_mode<synchronous>, transform_indices = @transform_2, window_bounds = array<i64: 1, 32>}, {pipeline_mode = #tpu.pipeline_mode<synchronous>, transform_indices = @transform_3, window_bounds = array<i64: 32, 32>}, {pipeline_mode = #tpu.pipeline_mode<synchronous>, transform_indices = @transform_4, window_bounds = array<i64: 1, 32>}, {pipeline_mode = #tpu.pipeline_mode<synchronous>, transform_indices = @transform_5, window_bounds = array<i64: 1, 32>}, {pipeline_mode = #tpu.pipeline_mode<synchronous>, transform_indices = @transform_6, window_bounds = array<i64: 1, 1>}, {transform_indices = @transform_7, window_bounds = array<i64: 8, 1>}]} {
    %c0 = arith.constant 0 : index
    %c0_0 = arith.constant 0 : index
    %0 = vector.load %arg1[%c0, %c0_0] : memref<8x12xf32, #tpu.memory_space<vmem>>, vector<8x12xf32>
    %c0_1 = arith.constant 0 : index
    %c0_2 = arith.constant 0 : index
    %1 = vector.load %arg2[%c0_1, %c0_2] : memref<12x32xf32, #tpu.memory_space<vmem>>, vector<12x32xf32>
    %cst = arith.constant dense<0.000000e+00> : vector<8x32xf32>
    %2 = tpu.matmul %0, %1, %cst {dimension_numbers = #tpu.dot_dimension_numbers<[1], [0], [0], [1], [0, 0, 1, 1], [], []>} : vector<8x12xf32>, vector<12x32xf32>, vector<8x32xf32> -> vector<8x32xf32>
    %c0_3 = arith.constant 0 : index
    %c0_4 = arith.constant 0 : index
    %3 = vector.load %arg3[%c0_3, %c0_4] : memref<1x32xf32, #tpu.memory_space<vmem>>, vector<1x32xf32>
    %4 = vector.broadcast %3 : vector<1x32xf32> to vector<8x32xf32>
    %5 = arith.addf %2, %4 : vector<8x32xf32>
    %cst_5 = arith.constant 0.000000e+00 : f32
    %6 = vector.broadcast %cst_5 : f32 to vector<8x32xf32>
    %7 = arith.maximumf %5, %6 : vector<8x32xf32>
    %c0_6 = arith.constant 0 : index
    %c0_7 = arith.constant 0 : index
    %8 = vector.load %arg4[%c0_6, %c0_7] : memref<32x32xf32, #tpu.memory_space<vmem>>, vector<32x32xf32>
    %cst_8 = arith.constant dense<0.000000e+00> : vector<8x32xf32>
    %9 = tpu.matmul %7, %8, %cst_8 {dimension_numbers = #tpu.dot_dimension_numbers<[1], [0], [0], [1], [0, 0, 1, 1], [], []>} : vector<8x32xf32>, vector<32x32xf32>, vector<8x32xf32> -> vector<8x32xf32>
    %c0_9 = arith.constant 0 : index
    %c0_10 = arith.constant 0 : index
    %10 = vector.load %arg5[%c0_9, %c0_10] : memref<1x32xf32, #tpu.memory_space<vmem>>, vector<1x32xf32>
    %11 = vector.broadcast %10 : vector<1x32xf32> to vector<8x32xf32>
    %12 = arith.addf %9, %11 : vector<8x32xf32>
    %cst_11 = arith.constant 0.000000e+00 : f32
    %13 = vector.broadcast %cst_11 : f32 to vector<8x32xf32>
    %14 = arith.maximumf %12, %13 : vector<8x32xf32>
    %c0_12 = arith.constant 0 : index
    %c0_13 = arith.constant 0 : index
    %15 = vector.load %arg6[%c0_12, %c0_13] : memref<1x32xf32, #tpu.memory_space<vmem>>, vector<1x32xf32>
    %16 = vector.broadcast %15 : vector<1x32xf32> to vector<8x32xf32>
    %17 = arith.mulf %14, %16 : vector<8x32xf32>
    %cst_14 = arith.constant dense<0.000000e+00> : vector<8xf32>
    %18 = vector.multi_reduction <add>, %17, %cst_14 [1] : vector<8x32xf32> to vector<8xf32>
    %19 = vector.shape_cast %18 : vector<8xf32> to vector<8x1xf32>
    %c0_15 = arith.constant 0 : index
    %c0_16 = arith.constant 0 : index
    %20 = vector.load %arg7[%c0_15, %c0_16] : memref<1x1xf32, #tpu.memory_space<vmem>>, vector<1x1xf32>
    %21 = vector.broadcast %20 : vector<1x1xf32> to vector<8x1xf32>
    %22 = arith.addf %19, %21 : vector<8x1xf32>
    %c0_17 = arith.constant 0 : index
    %c0_18 = arith.constant 0 : index
    %23 = vector.load %arg8[%c0_17, %c0_18] : memref<8x1xf32, #tpu.memory_space<vmem>>, vector<8x1xf32>
    tpu.vector_store %arg8[%c0_17, %c0_18], %22 {strides = array<i32>} : memref<8x1xf32, #tpu.memory_space<vmem>>, vector<8x1xf32>,
    return
  }
  func.func @transform_0(%arg0: i32) -> (i32, i32) {
    %c0_i32 = arith.constant 0 : i32
    %c0_i32_0 = arith.constant 0 : i32
    return %arg0, %c0_i32 : i32, i32
  }
  func.func @transform_1(%arg0: i32) -> (i32, i32) {
    %c0_i32 = arith.constant 0 : i32
    %c0_i32_0 = arith.constant 0 : i32
    %c0_i32_1 = arith.constant 0 : i32
    return %c0_i32, %c0_i32_0 : i32, i32
  }
  func.func @transform_2(%arg0: i32) -> (i32, i32) {
    %c0_i32 = arith.constant 0 : i32
    %c0_i32_0 = arith.constant 0 : i32
    %c0_i32_1 = arith.constant 0 : i32
    return %c0_i32, %c0_i32_0 : i32, i32
  }
  func.func @transform_3(%arg0: i32) -> (i32, i32) {
    %c0_i32 = arith.constant 0 : i32
    %c0_i32_0 = arith.constant 0 : i32
    %c0_i32_1 = arith.constant 0 : i32
    return %c0_i32, %c0_i32_0 : i32, i32
  }
  func.func @transform_4(%arg0: i32) -> (i32, i32) {
    %c0_i32 = arith.constant 0 : i32
    %c0_i32_0 = arith.constant 0 : i32
    %c0_i32_1 = arith.constant 0 : i32
    return %c0_i32, %c0_i32_0 : i32, i32
  }
  func.func @transform_5(%arg0: i32) -> (i32, i32) {
    %c0_i32 = arith.constant 0 : i32
    %c0_i32_0 = arith.constant 0 : i32
    %c0_i32_1 = arith.constant 0 : i32
    return %c0_i32, %c0_i32_0 : i32, i32
  }
  func.func @transform_6(%arg0: i32) -> (i32, i32) {
    %c0_i32 = arith.constant 0 : i32
    %c0_i32_0 = arith.constant 0 : i32
    %c0_i32_1 = arith.constant 0 : i32
    return %c0_i32, %c0_i32_0 : i32, i32
  }
  func.func @transform_7(%arg0: i32) -> (i32, i32) {
    %c0_i32 = arith.constant 0 : i32
    %c0_i32_0 = arith.constant 0 : i32
    return %arg0, %c0_i32 : i32, i32
  }
}

</mosaic_0001>

<llo_original>
// kernel: tpu_custom_call.1
$region0: #{tpu_custom_call.1}
  #allocation0 [shape = 'u32[]', space=smem, size = 0x4, offset = 0x4, fixed_abs, tag = 'smem constant byte address 0x4 - core index']
  #allocation1 [shape = 'u32[144,128]{1,0:T(1,128)}', space=vmem, size = 0x12000, scoped, tag = 'internal scratch']
  #allocation2 [shape = 'f32[1,1]{1,0:T(1,128)S(1)}', space=vmem, size = 0x200, scoped, tag = 'scoped memory for tpu_custom_call.1']
  %s0 = inlined_call_operand.hbm [shape: f32[8,12], index: 0, kind: input, shape index: {}]
  %s1 = inlined_call_operand.hbm [shape: f32[12,32], index: 1, kind: input, shape index: {}]
  %s2 = inlined_call_operand.vmem [shape: f32[1,32], index: 2, kind: input, shape index: {}]
  %s3 = inlined_call_operand.hbm [shape: f32[32,32], index: 3, kind: input, shape index: {}]
  %s4 = inlined_call_operand.vmem [shape: f32[1,32], index: 4, kind: input, shape index: {}]
  %s5 = inlined_call_operand.vmem [shape: f32[1,32], index: 5, kind: input, shape index: {}]
  %s6 = inlined_call_operand.<no memory space> [shape: f32[1,1], index: 6, kind: input, shape index: {}]
  %s7 = inlined_call_operand.vmem [shape: f32[8,1], index: 7, kind: output, shape index: {}]
  %s8 = sld [smem:[#allocation0]]
  $region50: #{tpu_custom_call.1} parent=0
    _
  %s10 = ssub.s32 1, %s8
  %s11 = scalar_select 0, %s10, %s8
  %v12 = vstv %s6
  %13 = vst [vmem:[#allocation2] sm:$0x1] %v12
  $region1: #{tpu_custom_call.1} parent=0
    #allocation3 [shape = 'u8[4096]{0}', space=vmem, size = 0x1000, scoped, tag = 'input window, operand 0, single buffered']
    #allocation4 [shape = 's32[1]{0}', space=sflag, size = 0x4, scoped, tag = 'scoped memory for tpu_custom_call.1']
    #allocation5 [shape = 'u8[8192]{0}', space=vmem, size = 0x2000, scoped, tag = 'input window, operand 1, single buffered']
    #allocation6 [shape = 's32[1]{0}', space=sflag, size = 0x4, scoped, tag = 'scoped memory for tpu_custom_call.1']
    #allocation7 [shape = 'u8[16384]{0}', space=vmem, size = 0x4000, scoped, tag = 'input window, operand 3, single buffered']
    %14 = vsyncpa [#allocation4], 0
    %15 = vsyncpa [#allocation6], 0
    // Predicated region
    $region2: #{tpu_custom_call.1} parent=1 // pred_check
      _
    $region3: #{tpu_custom_call.1} parent=1 // pred_check_branch
      %17 = sbr.rel (0) target = $region5
    $region4: #{tpu_custom_call.1} parent=1 // pred_region
      %s19 = ssub.s32 128, 128
      %20 = vsyncadd [#allocation4], %s19
      %s22 = sshll.u32 [#allocation3], 4
      %s23 = int_to_ptr.vmem [resolvable:$true] %s22
      %25 = dma.hbm_to_vmem [thread:$0]  %s0, 128, %s23, [#allocation4]
    $region5: #{tpu_custom_call.1} parent=1 // pred_fallthru
      _
    // Predicated region
    $region6: #{tpu_custom_call.1} parent=1 // pred_check
      _
    $region7: #{tpu_custom_call.1} parent=1 // pred_check_branch
      %27 = sbr.rel (0) target = $region9
    $region8: #{tpu_custom_call.1} parent=1 // pred_region
      %s29 = ssub.s32 256, 256
      %30 = vsyncadd [#allocation6], %s29
      %s31 = sshll.u32 [#allocation5], 4
      %s32 = int_to_ptr.vmem [resolvable:$true] %s31
      %37 = dma.hbm_to_vmem [thread:$0]  %s1, 256, %s32, [#allocation6], 128, 128, 8
    $region9: #{tpu_custom_call.1} parent=1 // pred_fallthru
      _
    // Predicated region
    $region10: #{tpu_custom_call.1} parent=1 // pred_check
      _
    $region11: #{tpu_custom_call.1} parent=1 // pred_check_branch
      %39 = sbr.rel (0) target = $region13
    $region12: #{tpu_custom_call.1} parent=1 // pred_region
      _
    $region13: #{tpu_custom_call.1} parent=1 // pred_fallthru
      _
    // Predicated region
    $region14: #{tpu_custom_call.1} parent=1 // pred_check
      _
    $region15: #{tpu_custom_call.1} parent=1 // pred_check_branch
      %41 = sbr.rel (0) target = $region17
    $region16: #{tpu_custom_call.1} parent=1 // pred_region
      %s43 = ssub.s32 512, 512
      %44 = vsyncadd [#allocation6], %s43
      %s45 = sshll.u32 [#allocation7], 4
      %s46 = int_to_ptr.vmem [resolvable:$true] %s45
      %51 = dma.hbm_to_vmem [thread:$0]  %s3, 512, %s46, [#allocation6], 128, 128, 8
    $region17: #{tpu_custom_call.1} parent=1 // pred_fallthru
      _
    // Predicated region
    $region18: #{tpu_custom_call.1} parent=1 // pred_check
      _
    $region19: #{tpu_custom_call.1} parent=1 // pred_check_branch
      %53 = sbr.rel (0) target = $region21
    $region20: #{tpu_custom_call.1} parent=1 // pred_region
      _
    $region21: #{tpu_custom_call.1} parent=1 // pred_fallthru
      _
    // Predicated region
    $region22: #{tpu_custom_call.1} parent=1 // pred_check
      _
    $region23: #{tpu_custom_call.1} parent=1 // pred_check_branch
      %55 = sbr.rel (0) target = $region25
    $region24: #{tpu_custom_call.1} parent=1 // pred_region
      _
    $region25: #{tpu_custom_call.1} parent=1 // pred_fallthru
      _
    // Predicated region
    $region26: #{tpu_custom_call.1} parent=1 // pred_check
      _
    $region27: #{tpu_custom_call.1} parent=1 // pred_check_branch
      %57 = sbr.rel (0) target = $region29
    $region28: #{tpu_custom_call.1} parent=1 // pred_region
      _
    $region29: #{tpu_custom_call.1} parent=1 // pred_fallthru
      _
    // Predicated region
    $region30: #{tpu_custom_call.1} parent=1 // pred_check
      _
    $region31: #{tpu_custom_call.1} parent=1 // pred_check_branch
      %59 = sbr.rel (0) target = $region33
    $region32: #{tpu_custom_call.1} parent=1 // pred_region
      %60 = dma.done [#allocation4], 128
    $region33: #{tpu_custom_call.1} parent=1 // pred_fallthru
      _
    // Predicated region
    $region34: #{tpu_custom_call.1} parent=1 // pred_check
      _
    $region35: #{tpu_custom_call.1} parent=1 // pred_check_branch
      %62 = sbr.rel (0) target = $region37
    $region36: #{tpu_custom_call.1} parent=1 // pred_region
      %63 = dma.done [#allocation6], 256
    $region37: #{tpu_custom_call.1} parent=1 // pred_fallthru
      _
    // Predicated region
    $region38: #{tpu_custom_call.1} parent=1 // pred_check
      _
    $region39: #{tpu_custom_call.1} parent=1 // pred_check_branch
      %65 = sbr.rel (0) target = $region41
    $region40: #{tpu_custom_call.1} parent=1 // pred_region
      %66 = dma.done [#allocation6], 512
    $region41: #{tpu_custom_call.1} parent=1 // pred_fallthru
      _
    %v67 = vld [vmem:[#allocation3] sm:$0xff]
    %v68 = vld [vmem:[#allocation5] sm:$0xff]
    %v69 = vld [vmem:[#allocation5 + $0x8] sm:$0xf]
    %v70 = vld [vmem:[%s2] sm:$0x1]
    %v72 = vlaneseq
    %v73 = vshrl.u32 %v72, 7
    %v74 = vsub.s32 0, %v73
    %v75 = vrot.slane %v70, %v74
    %vm77 = vcmask 97280
    %v79 = vsel %vm77, %v67, 0
    %vm81 = vcmask 1043456
    %v83 = vsel %vm81, %v69, 0
    %85 = vmatprep.subr.mxu0 0.0
    %86 = vmatpush1.msra.mxu0 %v68
    %87 = vmatprep.subr.mxu0 0.0
    %88 = vmatpush1.msra.mxu0 %v83
    %89 = vmatprep.subr.mxu0 0.0
    %90 = vmatpush1.msra.mxu0 0.0
    %91 = vmatprep.subr.mxu0 0.0
    %92 = vmatpush1.msra.mxu0 0.0
    %93 = vmatprep.subr.mxu0 0.0
    %94 = vmatpush1.msra.mxu0 0.0
    %95 = vmatprep.subr.mxu0 0.0
    %96 = vmatpush1.msra.mxu0 0.0
    %97 = vmatprep.subr.mxu0 0.0
    %98 = vmatpush1.msra.mxu0 0.0
    %99 = vmatprep.subr.mxu0 0.0
    %100 = vmatpush1.msra.mxu0 0.0
    %101 = vmatprep.subr.mxu0 0.0
    %102 = vmatpush1.msra.mxu0 0.0
    %103 = vmatprep.subr.mxu0 0.0
    %104 = vmatpush1.msra.mxu0 0.0
    %105 = vmatprep.subr.mxu0 0.0
    %106 = vmatpush1.msra.mxu0 0.0
    %107 = vmatprep.subr.mxu0 0.0
    %108 = vmatpush1.msra.mxu0 0.0
    %109 = vmatprep.subr.mxu0 0.0
    %110 = vmatpush1.msra.mxu0 0.0
    %111 = vmatprep.subr.mxu0 0.0
    %112 = vmatpush1.msra.mxu0 0.0
    %113 = vmatprep.subr.mxu0 0.0
    %114 = vmatpush1.msra.mxu0 0.0
    %115 = vmatprep.subr.mxu0 0.0
    %116 = vmatpush1.msra.mxu0 0.0
    %117 = vmatprep.subr.mxu0 0.0
    %118 = vmatpush1.msra.mxu0 0.0
    %119 = vmatprep.subr.mxu0 0.0
    %120 = vmatpush1.msra.mxu0 0.0
    %121 = vmatprep.subr.mxu0 0.0
    %122 = vmatpush1.msra.mxu0 0.0
    %123 = vmatprep.subr.mxu0 0.0
    %124 = vmatpush1.msra.mxu0 0.0
    %125 = vmatprep.subr.mxu0 0.0
    %126 = vmatpush1.msra.mxu0 0.0
    %127 = vmatprep.subr.mxu0 0.0
    %128 = vmatpush1.msra.mxu0 0.0
    %129 = vmatprep.subr.mxu0 0.0
    %130 = vmatpush1.msra.mxu0 0.0
    %131 = vmatprep.subr.mxu0 0.0
    %132 = vmatpush1.msra.mxu0 0.0
    %133 = vmatprep.subr.mxu0 0.0
    %134 = vmatpush1.msra.mxu0 0.0
    %135 = vmatprep.subr.mxu0 0.0
    %136 = vmatpush1.msra.mxu0 0.0
    %137 = vmatprep.subr.mxu0 0.0
    %138 = vmatpush1.msra.mxu0 0.0
    %139 = vmatprep.subr.mxu0 0.0
    %140 = vmatpush1.msra.mxu0 0.0
    %141 = vmatprep.subr.mxu0 0.0
    %142 = vmatpush1.msra.mxu0 0.0
    %143 = vmatprep.subr.mxu0 0.0
    %144 = vmatpush1.msra.mxu0 0.0
    %145 = vmatprep.subr.mxu0 0.0
    %146 = vmatpush1.msra.mxu0 0.0
    %147 = vmatprep.subr.mxu0 0.0
    %148 = vmatpush1.msra.mxu0 0.0
    %149 = vmatprep.mubr.f32.mxu0 0.0
    %150 = vmatmul.mubr.f32.gmra.mrb[0].mxu0 %v79
    %v151 = vpop.f32.mrb[0].mxu0
    %v152 = vadd.f32 %v75, %v151
    %v153 = vpop.f32.mrb[0].mxu0
    %154 = vdwg.mxu0
    %v155 = vmax.f32 %v152, 0.0
    %v156 = vld [vmem:[#allocation7] sm:$0xff]
    %v157 = vld [vmem:[#allocation7 + $0x8] sm:$0xff]
    %v158 = vld [vmem:[#allocation7 + $0x10] sm:$0xff]
    %v159 = vld [vmem:[#allocation7 + $0x18] sm:$0xff]
    %v160 = vld [vmem:[%s4] sm:$0x1]
    %v162 = vlaneseq
    %v163 = vshrl.u32 %v162, 7
    %v164 = vsub.s32 0, %v163
    %v165 = vrot.slane %v160, %v164
    %vm167 = vcmask 261120
    %v169 = vsel %vm167, %v155, 0
    %171 = vmatprep.subr.mxu0 0.0
    %172 = vmatpush1.msra.mxu0 %v156
    %173 = vmatprep.subr.mxu0 0.0
    %174 = vmatpush1.msra.mxu0 %v157
    %175 = vmatprep.subr.mxu0 0.0
    %176 = vmatpush1.msra.mxu0 %v158
    %177 = vmatprep.subr.mxu0 0.0
    %178 = vmatpush1.msra.mxu0 %v159
    %179 = vmatprep.subr.mxu0 0.0
    %180 = vmatpush1.msra.mxu0 0.0
    %181 = vmatprep.subr.mxu0 0.0
    %182 = vmatpush1.msra.mxu0 0.0
    %183 = vmatprep.subr.mxu0 0.0
    %184 = vmatpush1.msra.mxu0 0.0
    %185 = vmatprep.subr.mxu0 0.0
    %186 = vmatpush1.msra.mxu0 0.0
    %187 = vmatprep.subr.mxu0 0.0
    %188 = vmatpush1.msra.mxu0 0.0
    %189 = vmatprep.subr.mxu0 0.0
    %190 = vmatpush1.msra.mxu0 0.0
    %191 = vmatprep.subr.mxu0 0.0
    %192 = vmatpush1.msra.mxu0 0.0
    %193 = vmatprep.subr.mxu0 0.0
    %194 = vmatpush1.msra.mxu0 0.0
    %195 = vmatprep.subr.mxu0 0.0
    %196 = vmatpush1.msra.mxu0 0.0
    %197 = vmatprep.subr.mxu0 0.0
    %198 = vmatpush1.msra.mxu0 0.0
    %199 = vmatprep.subr.mxu0 0.0
    %200 = vmatpush1.msra.mxu0 0.0
    %201 = vmatprep.subr.mxu0 0.0
    %202 = vmatpush1.msra.mxu0 0.0
    %203 = vmatprep.subr.mxu0 0.0
    %204 = vmatpush1.msra.mxu0 0.0
    %205 = vmatprep.subr.mxu0 0.0
    %206 = vmatpush1.msra.mxu0 0.0
    %207 = vmatprep.subr.mxu0 0.0
    %208 = vmatpush1.msra.mxu0 0.0
    %209 = vmatprep.subr.mxu0 0.0
    %210 = vmatpush1.msra.mxu0 0.0
    %211 = vmatprep.subr.mxu0 0.0
    %212 = vmatpush1.msra.mxu0 0.0
    %213 = vmatprep.subr.mxu0 0.0
    %214 = vmatpush1.msra.mxu0 0.0
    %215 = vmatprep.subr.mxu0 0.0
    %216 = vmatpush1.msra.mxu0 0.0
    %217 = vmatprep.subr.mxu0 0.0
    %218 = vmatpush1.msra.mxu0 0.0
    %219 = vmatprep.subr.mxu0 0.0
    %220 = vmatpush1.msra.mxu0 0.0
    %221 = vmatprep.subr.mxu0 0.0
    %222 = vmatpush1.msra.mxu0 0.0
    %223 = vmatprep.subr.mxu0 0.0
    %224 = vmatpush1.msra.mxu0 0.0
    %225 = vmatprep.subr.mxu0 0.0
    %226 = vmatpush1.msra.mxu0 0.0
    %227 = vmatprep.subr.mxu0 0.0
    %228 = vmatpush1.msra.mxu0 0.0
    %229 = vmatprep.subr.mxu0 0.0
    %230 = vmatpush1.msra.mxu0 0.0
    %231 = vmatprep.subr.mxu0 0.0
    %232 = vmatpush1.msra.mxu0 0.0
    %233 = vmatprep.subr.mxu0 0.0
    %234 = vmatpush1.msra.mxu0 0.0
    %235 = vmatprep.mubr.f32.mxu0 0.0
    %236 = vmatmul.mubr.f32.gmra.mrb[0].mxu0 %v169
    %v237 = vpop.f32.mrb[0].mxu0
    %v238 = vadd.f32 %v165, %v237
    %v239 = vpop.f32.mrb[0].mxu0
    %240 = vdwg.mxu0
    %v241 = vmax.f32 %v238, 0.0
    %v242 = vld [vmem:[%s5] sm:$0x1]
    %v244 = vlaneseq
    %v245 = vshrl.u32 %v244, 7
    %v246 = vsub.s32 0, %v245
    %v247 = vrot.slane %v242, %v246
    %v249 = vmul.f32 %v241, %v247
    %v250 = vsel %vm167, %v249, 0.0
    %251 = vadd.xlane.f32.xlu0 %v250
    %v252 = vpop.xlane.xlu0 %251
    %v253 = vld [vmem:[#allocation2] sm:$0x1]
    %v255 = vlaneseq
    %v256 = vshrl.u32 %v255, 7
    %v257 = vsub.s32 0, %v256
    %v258 = vrot.slane %v253, %v257
    %v260 = vadd.f32 %v252, %v258
    %vm261 = vcmask 7168
    %262 = vst.msk [vmem:[%s7] sm:$0xff] %vm261, %v260
    // Predicated region
    $region42: #{tpu_custom_call.1} parent=1 // pred_check
      _
    $region43: #{tpu_custom_call.1} parent=1 // pred_check_branch
      %264 = sbr.rel (0) target = $region45
    $region44: #{tpu_custom_call.1} parent=1 // pred_region
      _
    $region45: #{tpu_custom_call.1} parent=1 // pred_fallthru
      _
    // Predicated region
    $region46: #{tpu_custom_call.1} parent=1 // pred_check
      _
    $region47: #{tpu_custom_call.1} parent=1 // pred_check_branch
      %266 = sbr.rel (0) target = $region49
    $region48: #{tpu_custom_call.1} parent=1 // pred_region
      _
    $region49: #{tpu_custom_call.1} parent=1 // pred_fallthru
      _
    %267 = vsyncpa [#allocation4], 1
    %268 = vsyncpa [#allocation6], 1

</llo_original>
